<compile_context>
chip_gen: v7x
topology: tpu7x:2x2x1
jax: 0.10.0
libtpu: 0.0.40
codegen_flags: <defaults>
</compile_context>

<pallas_src>
import functools

import jax
import jax.numpy as jnp
from jax.experimental import pallas as pl
from jax.experimental.pallas import tpu as pltpu

_LANE = 128     # vreg lane width
_SUBLANE = 8    # f32 sublane count


def _round_up(n, m):
    return ((n + m - 1) // m) * m


def mlp_kernel(x_ref, w1_ref, b1_ref, w2_ref, b2_ref, o_ref):
    """Fused 2-layer MLP on VMEM-resident, lane-dense padded tiles.

    x_ref : (Bp, D_in)   padded activations (zero rows beyond real batch)
    w1_ref: (D_in, Hp)   W1, hidden cols zero-padded to 128
    b1_ref: (1, Hp)      b1, zero-padded
    w2_ref: (Hp, Op)     W2, hidden rows / output cols zero-padded to 128
    b2_ref: (1, Op)      b2, zero-padded
    o_ref : (Bp, Op)     padded output (lane-dense store, no masked vst)
    """
    # Layer 1: MXU matmul (K = real D_in, no padded contraction) + bias + ReLU.
    h = jnp.dot(x_ref[...], w1_ref[...], preferred_element_type=jnp.float32)
    h = jnp.maximum(h + b1_ref[...], 0.0)
    # Layer 2: padded hidden columns are exactly zero (zero W1 cols, zero b1),
    # and the corresponding W2 rows are also zero, so the math is unchanged.
    y = jnp.dot(h, w2_ref[...], preferred_element_type=jnp.float32)
    o_ref[...] = (y + b2_ref[...]).astype(o_ref.dtype)


def init_padded_params(w1, b1, w2, b2):
    """One-time parameter padding (call at model init, NOT per forward).

    w1: (D_in, H), b1: (H,), w2: (H, D_out), b2: (D_out,)
    Returns lane-dense padded tensors ready for neural_net_forward.
    """
    D_in, H = w1.shape
    D_out = w2.shape[1]
    Hp = _round_up(H, _LANE)
    Op = _round_up(D_out, _LANE)

    w1p = jnp.zeros((D_in, Hp), w1.dtype).at[:, :H].set(w1)
    b1p = jnp.zeros((1, Hp), b1.dtype).at[0, :H].set(b1.reshape(-1))
    w2p = jnp.zeros((Hp, Op), w2.dtype).at[:H, :D_out].set(w2)
    b2p = jnp.zeros((1, Op), b2.dtype).at[0, :D_out].set(b2.reshape(-1))
    return w1p, b1p, w2p, b2p


@functools.partial(jax.jit, static_argnames=("d_out",))
def neural_net_forward(x, w1p, b1p, w2p, b2p, *, d_out):
    """Pallas forward of NeuralNet: relu(x @ W1 + b1) @ W2 + b2.

    x           : (B, D_in) f32 (raw activations)
    w1p/b1p/... : pre-padded parameters from init_padded_params
    d_out       : real output feature count (static)
    """
    B, D_in = x.shape
    Op = w2p.shape[1]

    # Per-call padding is activations only: batch rows up to a full f32
    # sublane multiple.  Parameters arrive already padded from init.
    Bp = _round_up(max(B, _SUBLANE), _SUBLANE)
    xp = jnp.zeros((Bp, D_in), x.dtype).at[:B, :].set(x)

    # Grid-less call: whole problem is one full-array VMEM block per operand.
    out_p = pl.pallas_call(
        mlp_kernel,
        out_shape=jax.ShapeDtypeStruct((Bp, Op), x.dtype),
        in_specs=[pl.BlockSpec(memory_space=pltpu.MemorySpace.VMEM)] * 5,
        out_specs=pl.BlockSpec(memory_space=pltpu.MemorySpace.VMEM),
    )(xp, w1p, b1p, w2p, b2p)

    # Padded output rows hold relu(b1) @ W2 + b2 garbage (padded x rows are
    # zero but b1 still applies) -> always slice; never reuse out_p directly.
    return out_p[:B, :d_out]


if __name__ == "__main__":
    # Sizes consistent with the module: input_size = len(all_words) -> 32,
    # hidden_size = 8, output_size = len(tags) -> 6, batch = 4.
    input_size, hidden_size, output_size = 32, 8, 6
    batch = 4

    key = jax.random.PRNGKey(0)
    kx, kw1, kb1, kw2, kb2 = jax.random.split(key, 5)

    x = jax.random.normal(kx, (batch, input_size), dtype=jnp.float32)

    # PyTorch Linear stores weight as (out, in); generate that way and
    # transpose to (in, out) for the kernel (y = x @ W.T + b).
    w1_t = jax.random.normal(kw1, (hidden_size, input_size), dtype=jnp.float32) * 0.1
    b1 = jax.random.normal(kb1, (hidden_size,), dtype=jnp.float32) * 0.1
    w2_t = jax.random.normal(kw2, (output_size, hidden_size), dtype=jnp.float32) * 0.1
    b2 = jax.random.normal(kb2, (output_size,), dtype=jnp.float32) * 0.1

    w1 = w1_t.T  # (input_size, hidden_size)
    w2 = w2_t.T  # (hidden_size, output_size)

    # One-time padding at "model init" — outside the per-call jitted path.
    w1p, b1p, w2p, b2p = init_padded_params(w1, b1, w2, b2)

    out = jax.block_until_ready(
        neural_net_forward(x, w1p, b1p, w2p, b2p, d_out=output_size))

    # Plain-JAX reference (same semantics as the PyTorch forward).
    ref = jnp.maximum(x @ w1 + b1, 0.0) @ w2 + b2
    assert out.shape == (batch, output_size)
    assert jnp.allclose(out, ref, atol=1e-5, rtol=1e-5)

    print("KERNEL_OK")
</pallas_src>

<mosaic_0001>
module attributes {stable_mosaic.version = 11 : i64} {
  func.func @mlp_kernel(%arg0: memref<8x32xf32, #tpu.memory_space<vmem>>, %arg1: memref<32x128xf32, #tpu.memory_space<vmem>>, %arg2: memref<1x128xf32, #tpu.memory_space<vmem>>, %arg3: memref<128x128xf32, #tpu.memory_space<vmem>>, %arg4: memref<1x128xf32, #tpu.memory_space<vmem>>, %arg5: memref<8x128xf32, #tpu.memory_space<vmem>>) attributes {dimension_semantics = [], scalar_prefetch = 0 : i64, scratch_operands = 0 : i64, tpu.core_type = #tpu.core_type<tc>} {
    %c0 = arith.constant 0 : index
    %c0_0 = arith.constant 0 : index
    %0 = vector.load %arg0[%c0, %c0_0] : memref<8x32xf32, #tpu.memory_space<vmem>>, vector<8x32xf32>
    %c0_1 = arith.constant 0 : index
    %c0_2 = arith.constant 0 : index
    %1 = vector.load %arg1[%c0_1, %c0_2] : memref<32x128xf32, #tpu.memory_space<vmem>>, vector<32x128xf32>
    %cst = arith.constant dense<0.000000e+00> : vector<8x128xf32>
    %2 = tpu.matmul %0, %1, %cst {dimension_numbers = #tpu.dot_dimension_numbers<[1], [0], [0], [1], [0, 0, 1, 1], [], []>} : vector<8x32xf32>, vector<32x128xf32>, vector<8x128xf32> -> vector<8x128xf32>
    %c0_3 = arith.constant 0 : index
    %c0_4 = arith.constant 0 : index
    %3 = vector.load %arg2[%c0_3, %c0_4] : memref<1x128xf32, #tpu.memory_space<vmem>>, vector<1x128xf32>
    %4 = vector.broadcast %3 : vector<1x128xf32> to vector<8x128xf32>
    %5 = arith.addf %2, %4 : vector<8x128xf32>
    %cst_5 = arith.constant 0.000000e+00 : f32
    %6 = vector.broadcast %cst_5 : f32 to vector<8x128xf32>
    %7 = arith.maximumf %5, %6 : vector<8x128xf32>
    %c0_6 = arith.constant 0 : index
    %c0_7 = arith.constant 0 : index
    %8 = vector.load %arg3[%c0_6, %c0_7] : memref<128x128xf32, #tpu.memory_space<vmem>>, vector<128x128xf32>
    %cst_8 = arith.constant dense<0.000000e+00> : vector<8x128xf32>
    %9 = tpu.matmul %7, %8, %cst_8 {dimension_numbers = #tpu.dot_dimension_numbers<[1], [0], [0], [1], [0, 0, 1, 1], [], []>} : vector<8x128xf32>, vector<128x128xf32>, vector<8x128xf32> -> vector<8x128xf32>
    %c0_9 = arith.constant 0 : index
    %c0_10 = arith.constant 0 : index
    %10 = vector.load %arg4[%c0_9, %c0_10] : memref<1x128xf32, #tpu.memory_space<vmem>>, vector<1x128xf32>
    %11 = vector.broadcast %10 : vector<1x128xf32> to vector<8x128xf32>
    %12 = arith.addf %9, %11 : vector<8x128xf32>
    %c0_11 = arith.constant 0 : index
    %c0_12 = arith.constant 0 : index
    %13 = vector.load %arg5[%c0_11, %c0_12] : memref<8x128xf32, #tpu.memory_space<vmem>>, vector<8x128xf32>
    tpu.vector_store %arg5[%c0_11, %c0_12], %12 {strides = array<i32>} : memref<8x128xf32, #tpu.memory_space<vmem>>, vector<8x128xf32>,
    return
  }
}

</mosaic_0001>

<llo_original>
// kernel: neural_net_forward.1
$region0: #{neural_net_forward.1}
  #allocation0 [shape = 'u32[]', space=smem, size = 0x4, offset = 0x4, fixed_abs, tag = 'smem constant byte address 0x4 - core index']
  #allocation1 [shape = 'u32[144,128]{1,0:T(1,128)}', space=vmem, size = 0x12000, scoped, tag = 'internal scratch']
  %s0 = inlined_call_operand.vmem [shape: f32[8,32], index: 0, kind: input, shape index: {}]
  %s1 = inlined_call_operand.hbm [shape: f32[32,128], index: 1, kind: input, shape index: {}]
  %s2 = inlined_call_operand.vmem [shape: f32[1,128], index: 2, kind: input, shape index: {}]
  %s3 = inlined_call_operand.hbm [shape: f32[128,128], index: 3, kind: input, shape index: {}]
  %s4 = inlined_call_operand.vmem [shape: f32[1,128], index: 4, kind: input, shape index: {}]
  %s5 = inlined_call_operand.vmem [shape: f32[8,128], index: 5, kind: output, shape index: {}]
  %s6 = sld [smem:[#allocation0]]
  $region38: #{neural_net_forward.1} parent=0
    _
  %s8 = ssub.s32 1, %s6
  %s9 = scalar_select 0, %s8, %s6
  $region1: #{neural_net_forward.1} parent=0
    #allocation2 [shape = 'u8[16384]{0}', space=vmem, size = 0x4000, scoped, tag = 'input window, operand 1, single buffered']
    #allocation3 [shape = 's32[1]{0}', space=sflag, size = 0x4, scoped, tag = 'scoped memory for neural_net_forward.1']
    #allocation4 [shape = 'u8[65536]{0}', space=vmem, size = 0x10000, scoped, tag = 'input window, operand 3, single buffered']
    #allocation5 [shape = 's32[1]{0}', space=sflag, size = 0x4, scoped, tag = 'scoped memory for neural_net_forward.1']
    %10 = vsyncpa [#allocation3], 0
    %11 = vsyncpa [#allocation5], 0
    // Predicated region
    $region2: #{neural_net_forward.1} parent=1 // pred_check
      _
    $region3: #{neural_net_forward.1} parent=1 // pred_check_branch
      %13 = sbr.rel (0) target = $region5
    $region4: #{neural_net_forward.1} parent=1 // pred_region
      _
    $region5: #{neural_net_forward.1} parent=1 // pred_fallthru
      _
    // Predicated region
    $region6: #{neural_net_forward.1} parent=1 // pred_check
      _
    $region7: #{neural_net_forward.1} parent=1 // pred_check_branch
      %15 = sbr.rel (0) target = $region9
    $region8: #{neural_net_forward.1} parent=1 // pred_region
      %s17 = ssub.s32 512, 512
      %18 = vsyncadd [#allocation3], %s17
      %s19 = sshll.u32 [#allocation2], 4
      %s20 = int_to_ptr.vmem [resolvable:$true] %s19
      %25 = dma.hbm_to_vmem [thread:$0]  %s1, 512, %s20, [#allocation3], 128, 128, 8
    $region9: #{neural_net_forward.1} parent=1 // pred_fallthru
      _
    // Predicated region
    $region10: #{neural_net_forward.1} parent=1 // pred_check
      _
    $region11: #{neural_net_forward.1} parent=1 // pred_check_branch
      %27 = sbr.rel (0) target = $region13
    $region12: #{neural_net_forward.1} parent=1 // pred_region
      _
    $region13: #{neural_net_forward.1} parent=1 // pred_fallthru
      _
    // Predicated region
    $region14: #{neural_net_forward.1} parent=1 // pred_check
      _
    $region15: #{neural_net_forward.1} parent=1 // pred_check_branch
      %29 = sbr.rel (0) target = $region17
    $region16: #{neural_net_forward.1} parent=1 // pred_region
      %s31 = ssub.s32 2048, 2048
      %32 = vsyncadd [#allocation5], %s31
      %s33 = sshll.u32 [#allocation4], 4
      %s34 = int_to_ptr.vmem [resolvable:$true] %s33
      %39 = dma.hbm_to_vmem [thread:$0]  %s3, 2048, %s34, [#allocation5], 128, 128, 8
    $region17: #{neural_net_forward.1} parent=1 // pred_fallthru
      _
    // Predicated region
    $region18: #{neural_net_forward.1} parent=1 // pred_check
      _
    $region19: #{neural_net_forward.1} parent=1 // pred_check_branch
      %41 = sbr.rel (0) target = $region21
    $region20: #{neural_net_forward.1} parent=1 // pred_region
      _
    $region21: #{neural_net_forward.1} parent=1 // pred_fallthru
      _
    // Predicated region
    $region22: #{neural_net_forward.1} parent=1 // pred_check
      _
    $region23: #{neural_net_forward.1} parent=1 // pred_check_branch
      %43 = sbr.rel (0) target = $region25
    $region24: #{neural_net_forward.1} parent=1 // pred_region
      %44 = dma.done [#allocation3], 512
    $region25: #{neural_net_forward.1} parent=1 // pred_fallthru
      _
    // Predicated region
    $region26: #{neural_net_forward.1} parent=1 // pred_check
      _
    $region27: #{neural_net_forward.1} parent=1 // pred_check_branch
      %46 = sbr.rel (0) target = $region29
    $region28: #{neural_net_forward.1} parent=1 // pred_region
      %47 = dma.done [#allocation5], 2048
    $region29: #{neural_net_forward.1} parent=1 // pred_fallthru
      _
    %v48 = vld [vmem:[%s0] sm:$0xff]
    %v49 = vld [vmem:[#allocation2] sm:$0xff]
    %v50 = vld [vmem:[#allocation2 + $0x8] sm:$0xff]
    %v51 = vld [vmem:[#allocation2 + $0x10] sm:$0xff]
    %v52 = vld [vmem:[#allocation2 + $0x18] sm:$0xff]
    %v53 = vld [vmem:[%s2] sm:$0x1]
    %v55 = vlaneseq
    %v56 = vshrl.u32 %v55, 7
    %v57 = vsub.s32 0, %v56
    %v58 = vrot.slane %v53, %v57
    %vm60 = vcmask 261120
    %v62 = vsel %vm60, %v48, 0
    %64 = vmatprep.subr.mxu0 0.0
    %65 = vmatpush1.msra.mxu0 %v49
    %66 = vmatprep.subr.mxu0 0.0
    %67 = vmatpush1.msra.mxu0 %v50
    %68 = vmatprep.subr.mxu0 0.0
    %69 = vmatpush1.msra.mxu0 %v51
    %70 = vmatprep.subr.mxu0 0.0
    %71 = vmatpush1.msra.mxu0 %v52
    %72 = vmatprep.subr.mxu0 0.0
    %73 = vmatpush1.msra.mxu0 0.0
    %74 = vmatprep.subr.mxu0 0.0
    %75 = vmatpush1.msra.mxu0 0.0
    %76 = vmatprep.subr.mxu0 0.0
    %77 = vmatpush1.msra.mxu0 0.0
    %78 = vmatprep.subr.mxu0 0.0
    %79 = vmatpush1.msra.mxu0 0.0
    %80 = vmatprep.subr.mxu0 0.0
    %81 = vmatpush1.msra.mxu0 0.0
    %82 = vmatprep.subr.mxu0 0.0
    %83 = vmatpush1.msra.mxu0 0.0
    %84 = vmatprep.subr.mxu0 0.0
    %85 = vmatpush1.msra.mxu0 0.0
    %86 = vmatprep.subr.mxu0 0.0
    %87 = vmatpush1.msra.mxu0 0.0
    %88 = vmatprep.subr.mxu0 0.0
    %89 = vmatpush1.msra.mxu0 0.0
    %90 = vmatprep.subr.mxu0 0.0
    %91 = vmatpush1.msra.mxu0 0.0
    %92 = vmatprep.subr.mxu0 0.0
    %93 = vmatpush1.msra.mxu0 0.0
    %94 = vmatprep.subr.mxu0 0.0
    %95 = vmatpush1.msra.mxu0 0.0
    %96 = vmatprep.subr.mxu0 0.0
    %97 = vmatpush1.msra.mxu0 0.0
    %98 = vmatprep.subr.mxu0 0.0
    %99 = vmatpush1.msra.mxu0 0.0
    %100 = vmatprep.subr.mxu0 0.0
    %101 = vmatpush1.msra.mxu0 0.0
    %102 = vmatprep.subr.mxu0 0.0
    %103 = vmatpush1.msra.mxu0 0.0
    %104 = vmatprep.subr.mxu0 0.0
    %105 = vmatpush1.msra.mxu0 0.0
    %106 = vmatprep.subr.mxu0 0.0
    %107 = vmatpush1.msra.mxu0 0.0
    %108 = vmatprep.subr.mxu0 0.0
    %109 = vmatpush1.msra.mxu0 0.0
    %110 = vmatprep.subr.mxu0 0.0
    %111 = vmatpush1.msra.mxu0 0.0
    %112 = vmatprep.subr.mxu0 0.0
    %113 = vmatpush1.msra.mxu0 0.0
    %114 = vmatprep.subr.mxu0 0.0
    %115 = vmatpush1.msra.mxu0 0.0
    %116 = vmatprep.subr.mxu0 0.0
    %117 = vmatpush1.msra.mxu0 0.0
    %118 = vmatprep.subr.mxu0 0.0
    %119 = vmatpush1.msra.mxu0 0.0
    %120 = vmatprep.subr.mxu0 0.0
    %121 = vmatpush1.msra.mxu0 0.0
    %122 = vmatprep.subr.mxu0 0.0
    %123 = vmatpush1.msra.mxu0 0.0
    %124 = vmatprep.subr.mxu0 0.0
    %125 = vmatpush1.msra.mxu0 0.0
    %126 = vmatprep.subr.mxu0 0.0
    %127 = vmatpush1.msra.mxu0 0.0
    %128 = vmatprep.mubr.f32.mxu0 0.0
    %129 = vmatmul.mubr.f32.gmra.mrb[0].mxu0 %v62
    %v130 = vpop.f32.mrb[0].mxu0
    %v131 = vadd.f32 %v58, %v130
    %v132 = vpop.f32.mrb[0].mxu0
    %133 = vdwg.mxu0
    %v134 = vmax.f32 %v131, 0.0
    %v135 = vld [vmem:[#allocation4] sm:$0xff]
    %v136 = vld [vmem:[#allocation4 + $0x8] sm:$0xff]
    %v137 = vld [vmem:[#allocation4 + $0x10] sm:$0xff]
    %v138 = vld [vmem:[#allocation4 + $0x18] sm:$0xff]
    %v139 = vld [vmem:[#allocation4 + $0x20] sm:$0xff]
    %v140 = vld [vmem:[#allocation4 + $0x28] sm:$0xff]
    %v141 = vld [vmem:[#allocation4 + $0x30] sm:$0xff]
    %v142 = vld [vmem:[#allocation4 + $0x38] sm:$0xff]
    %v143 = vld [vmem:[#allocation4 + $0x40] sm:$0xff]
    %v144 = vld [vmem:[#allocation4 + $0x48] sm:$0xff]
    %v145 = vld [vmem:[#allocation4 + $0x50] sm:$0xff]
    %v146 = vld [vmem:[#allocation4 + $0x58] sm:$0xff]
    %v147 = vld [vmem:[#allocation4 + $0x60] sm:$0xff]
    %v148 = vld [vmem:[#allocation4 + $0x68] sm:$0xff]
    %v149 = vld [vmem:[#allocation4 + $0x70] sm:$0xff]
    %v150 = vld [vmem:[#allocation4 + $0x78] sm:$0xff]
    %v151 = vld [vmem:[%s4] sm:$0x1]
    %v153 = vlaneseq
    %v154 = vshrl.u32 %v153, 7
    %v155 = vsub.s32 0, %v154
    %v156 = vrot.slane %v151, %v155
    %158 = vmatprep.subr.mxu0 0.0
    %159 = vmatpush1.msra.mxu0 %v135
    %160 = vmatprep.subr.mxu0 0.0
    %161 = vmatpush1.msra.mxu0 %v136
    %162 = vmatprep.subr.mxu0 0.0
    %163 = vmatpush1.msra.mxu0 %v137
    %164 = vmatprep.subr.mxu0 0.0
    %165 = vmatpush1.msra.mxu0 %v138
    %166 = vmatprep.subr.mxu0 0.0
    %167 = vmatpush1.msra.mxu0 %v139
    %168 = vmatprep.subr.mxu0 0.0
    %169 = vmatpush1.msra.mxu0 %v140
    %170 = vmatprep.subr.mxu0 0.0
    %171 = vmatpush1.msra.mxu0 %v141
    %172 = vmatprep.subr.mxu0 0.0
    %173 = vmatpush1.msra.mxu0 %v142
    %174 = vmatprep.subr.mxu0 0.0
    %175 = vmatpush1.msra.mxu0 %v143
    %176 = vmatprep.subr.mxu0 0.0
    %177 = vmatpush1.msra.mxu0 %v144
    %178 = vmatprep.subr.mxu0 0.0
    %179 = vmatpush1.msra.mxu0 %v145
    %180 = vmatprep.subr.mxu0 0.0
    %181 = vmatpush1.msra.mxu0 %v146
    %182 = vmatprep.subr.mxu0 0.0
    %183 = vmatpush1.msra.mxu0 %v147
    %184 = vmatprep.subr.mxu0 0.0
    %185 = vmatpush1.msra.mxu0 %v148
    %186 = vmatprep.subr.mxu0 0.0
    %187 = vmatpush1.msra.mxu0 %v149
    %188 = vmatprep.subr.mxu0 0.0
    %189 = vmatpush1.msra.mxu0 %v150
    %190 = vmatprep.subr.mxu0 0.0
    %191 = vmatpush1.msra.mxu0 0.0
    %192 = vmatprep.subr.mxu0 0.0
    %193 = vmatpush1.msra.mxu0 0.0
    %194 = vmatprep.subr.mxu0 0.0
    %195 = vmatpush1.msra.mxu0 0.0
    %196 = vmatprep.subr.mxu0 0.0
    %197 = vmatpush1.msra.mxu0 0.0
    %198 = vmatprep.subr.mxu0 0.0
    %199 = vmatpush1.msra.mxu0 0.0
    %200 = vmatprep.subr.mxu0 0.0
    %201 = vmatpush1.msra.mxu0 0.0
    %202 = vmatprep.subr.mxu0 0.0
    %203 = vmatpush1.msra.mxu0 0.0
    %204 = vmatprep.subr.mxu0 0.0
    %205 = vmatpush1.msra.mxu0 0.0
    %206 = vmatprep.subr.mxu0 0.0
    %207 = vmatpush1.msra.mxu0 0.0
    %208 = vmatprep.subr.mxu0 0.0
    %209 = vmatpush1.msra.mxu0 0.0
    %210 = vmatprep.subr.mxu0 0.0
    %211 = vmatpush1.msra.mxu0 0.0
    %212 = vmatprep.subr.mxu0 0.0
    %213 = vmatpush1.msra.mxu0 0.0
    %214 = vmatprep.subr.mxu0 0.0
    %215 = vmatpush1.msra.mxu0 0.0
    %216 = vmatprep.subr.mxu0 0.0
    %217 = vmatpush1.msra.mxu0 0.0
    %218 = vmatprep.subr.mxu0 0.0
    %219 = vmatpush1.msra.mxu0 0.0
    %220 = vmatprep.subr.mxu0 0.0
    %221 = vmatpush1.msra.mxu0 0.0
    %222 = vmatprep.mubr.f32.mxu0 0.0
    %223 = vmatmul.mubr.f32.gmra.mrb[0].mxu0 %v134
    %v224 = vpop.f32.mrb[0].mxu0
    %v225 = vadd.f32 %v156, %v224
    %v226 = vpop.f32.mrb[0].mxu0
    %227 = vdwg.mxu0
    %228 = vst [vmem:[%s5] sm:$0xff] %v225
    // Predicated region
    $region30: #{neural_net_forward.1} parent=1 // pred_check
      _
    $region31: #{neural_net_forward.1} parent=1 // pred_check_branch
      %230 = sbr.rel (0) target = $region33
    $region32: #{neural_net_forward.1} parent=1 // pred_region
      _
    $region33: #{neural_net_forward.1} parent=1 // pred_fallthru
      _
    // Predicated region
    $region34: #{neural_net_forward.1} parent=1 // pred_check
      _
    $region35: #{neural_net_forward.1} parent=1 // pred_check_branch
      %232 = sbr.rel (0) target = $region37
    $region36: #{neural_net_forward.1} parent=1 // pred_region
      _
    $region37: #{neural_net_forward.1} parent=1 // pred_fallthru
      _
    %233 = vsyncpa [#allocation3], 1
    %234 = vsyncpa [#allocation5], 1

</llo_original>
